<compile_context>
chip_gen: v5e
topology: v5e:2x2
jax: 0.10.0
libtpu: 0.0.40
codegen_flags: <defaults>
</compile_context>

<pallas_src>
import jax
import jax.numpy as jnp
from jax.experimental import pallas as pl
from jax.experimental.pallas import tpu as pltpu


_TILE_BUDGET_BYTES = 4 * 1024 * 1024     # per-tile target (~4 MiB)
_VMEM_LIMIT_BYTES = 48 * 1024 * 1024     # safe on v5e/v6e (128 MiB) and v7x (64 MiB)
_SMALL_PROBLEM_BYTES = 512 * 1024        # below this, XLA fusion is as fast as a custom call


def _round_up(x, m):
    return ((x + m - 1) // m) * m


def _actnorm_fwd_kernel(x_ref, p_ref, o_ref):
    # y = (x + bias_row) * scale_row ; params broadcast along the lane (H*W) dim.
    x = x_ref[...].astype(jnp.float32)
    p = p_ref[...]                 # (rb, 2) f32: [:, 0] = bias, [:, 1] = exp(logs)
    bias = p[:, 0:1]
    scale = p[:, 1:2]
    o_ref[...] = ((x + bias) * scale).astype(o_ref.dtype)


def _actnorm_rev_kernel(x_ref, p_ref, o_ref):
    # reverse: y = x * exp(-logs) - bias
    x = x_ref[...].astype(jnp.float32)
    p = p_ref[...]                 # (rb, 2) f32: [:, 0] = bias, [:, 1] = exp(-logs)
    bias = p[:, 0:1]
    inv_scale = p[:, 1:2]
    o_ref[...] = (x * inv_scale - bias).astype(o_ref.dtype)


def _choose_blocks(M, L, itemsize, budget=_TILE_BUDGET_BYTES):
    """Pick (rb, lb) so rb*lb*itemsize ~<= budget, preferring full lane width."""
    # --- lane dim: full width unless even an 8-row slab blows the budget ---
    if 8 * L * itemsize <= budget:
        lb = L                                           # full dim (always legal)
    else:
        lb = max(128, ((budget // (8 * itemsize)) // 128) * 128)
        lb = min(lb, L)

    # --- row dim: fill the remaining budget, multiple of 8 (or full dim) ---
    if M <= 8:
        rb = M                                           # full dim (always legal)
    else:
        rows = budget // (lb * itemsize)
        if rows >= M:
            rb = M                                       # whole row axis in one block
        else:
            rb = max(8, (rows // 8) * 8)

    # --- megacore (v7x): ensure >= 2 grid steps along some parallel axis ---
    if M >= 16 and pl.cdiv(M, rb) < 2 and pl.cdiv(L, lb) < 2:
        rb = max(8, _round_up((M + 1) // 2, 8))          # < M for all M >= 16

    return rb, lb


def _run_actnorm_rows(x2d, params_rows, *, reverse, donate_x=False):
    """x2d: (N*C, H*W) contiguous NCHW view; params_rows: (N*C, 2) f32 [bias, scale]."""
    M, L = x2d.shape
    itemsize = jnp.dtype(x2d.dtype).itemsize

    rb, lb = _choose_blocks(M, L, itemsize)
    grid = (pl.cdiv(M, rb), pl.cdiv(L, lb))

    kernel = _actnorm_rev_kernel if reverse else _actnorm_fwd_kernel
    cost = pl.CostEstimate(
        flops=2 * M * L,
        transcendentals=0,
        bytes_accessed=2 * M * L * itemsize + M * 2 * 4,
    )

    return pl.pallas_call(
        kernel,
        out_shape=jax.ShapeDtypeStruct((M, L), x2d.dtype),
        grid_spec=pltpu.PrefetchScalarGridSpec(
            num_scalar_prefetch=0,
            grid=grid,
            in_specs=[
                pl.BlockSpec((rb, lb), lambda i, j: (i, j)),
                pl.BlockSpec((rb, 2), lambda i, j: (i, 0)),
            ],
            out_specs=pl.BlockSpec((rb, lb), lambda i, j: (i, j)),
        ),
        compiler_params=pltpu.CompilerParams(
            dimension_semantics=("parallel", "parallel"),
            vmem_limit_bytes=_VMEM_LIMIT_BYTES,
        ),
        cost_estimate=cost,
        input_output_aliases=({0: 0} if donate_x else {}),
    )(x2d, params_rows)


def actnorm_forward(x, bias, logs, ldj=None, reverse=False,
                    force_pallas=False, donate_x=False):
    """ActNorm forward matching the PyTorch module.

    x:    (N, C, H, W)  -- NCHW, same as PyTorch
    bias: (1, C, 1, 1)
    logs: (1, C, 1, 1)
    ldj:  optional (N,) running sum of log-determinants
    """
    N, C, H, W = x.shape
    M, L = N * C, H * W

    # Parameter prep (tiny, done once in f32 for precision even if x is bf16).
    bias_c = bias.reshape(C).astype(jnp.float32)
    logs_c = logs.reshape(C).astype(jnp.float32)
    scale_c = jnp.exp(-logs_c) if reverse else jnp.exp(logs_c)

    small = (M * L * jnp.dtype(x.dtype).itemsize) < _SMALL_PROBLEM_BYTES
    if small and not force_pallas:
        # Fast path: fixed launch overhead would dominate; let XLA fuse it.
        b4 = bias_c.reshape(1, C, 1, 1)
        s4 = scale_c.reshape(1, C, 1, 1)
        xf = x.astype(jnp.float32)
        y = (xf * s4 - b4) if reverse else ((xf + b4) * s4)
        y = y.astype(x.dtype)
    else:
        # Free reshape of contiguous NCHW; packed per-row (bias, scale) table.
        x2d = x.reshape(M, L)
        params_c = jnp.stack([bias_c, scale_c], axis=-1)          # (C, 2)
        params_rows = jnp.broadcast_to(params_c[None], (N, C, 2)).reshape(M, 2)
        y2d = _run_actnorm_rows(x2d, params_rows, reverse=reverse,
                                donate_x=donate_x)
        y = y2d.reshape(N, C, H, W)

    if ldj is not None:
        # Tiny parameter-only arithmetic; kept as glue.
        delta = jnp.sum(logs_c).astype(ldj.dtype) * H * W
        ldj = ldj - delta if reverse else ldj + delta
    return y, ldj


def init_actnorm_params(x, scale=1.0, eps=1e-6):
    """Deterministic data-dependent init, identical to initialize_parameters."""
    # TODO(synk): data-dependent init is a one-time tiny reduction; kept in plain JAX.
    bias = -jnp.mean(x, axis=(0, 2, 3), keepdims=True)            # (1,C,1,1)
    v = jnp.mean((x + bias) ** 2, axis=(0, 2, 3), keepdims=True)  # (1,C,1,1)
    logs = jnp.log(scale / (jnp.sqrt(v) + eps))
    return bias, logs


if __name__ == "__main__":
    key = jax.random.PRNGKey(0)
    N, C, H, W = 2, 4, 16, 16
    x = jax.random.normal(key, (N, C, H, W), dtype=jnp.float32) * 1.5 + 0.3

    # Parameters initialized deterministically (Glow data-dependent init on x).
    bias, logs = init_actnorm_params(x, scale=1.0)
    sldj0 = jnp.zeros((N,), dtype=jnp.float32)

    # Forward through the Pallas kernel (force it past the small-problem fast path).
    y, sldj = actnorm_forward(x, bias, logs, ldj=sldj0, reverse=False,
                              force_pallas=True)
    y = jax.block_until_ready(y)
    sldj = jax.block_until_ready(sldj)

    y_ref = (x + bias) * jnp.exp(logs)
    sldj_ref = sldj0 + jnp.sum(logs) * H * W
    assert y.shape == (N, C, H, W) and y.dtype == x.dtype
    assert jnp.allclose(y, y_ref, atol=1e-5, rtol=1e-5)
    assert jnp.allclose(sldj, sldj_ref, atol=1e-5, rtol=1e-5)

    # Reverse through the Pallas kernel.
    y_rev, sldj_rev = actnorm_forward(x, bias, logs, ldj=sldj0, reverse=True,
                                      force_pallas=True)
    y_rev = jax.block_until_ready(y_rev)
    y_rev_ref = x * jnp.exp(-logs) - bias
    sldj_rev_ref = sldj0 - jnp.sum(logs) * H * W
    assert jnp.allclose(y_rev, y_rev_ref, atol=1e-5, rtol=1e-5)
    assert jnp.allclose(sldj_rev, sldj_rev_ref, atol=1e-5, rtol=1e-5)

    # Small-problem auto path (plain jnp) must agree too.
    y_auto, sldj_auto = actnorm_forward(x, bias, logs, ldj=sldj0, reverse=False)
    y_auto = jax.block_until_ready(y_auto)
    assert jnp.allclose(y_auto, y_ref, atol=1e-5, rtol=1e-5)
    assert jnp.allclose(sldj_auto, sldj_ref, atol=1e-5, rtol=1e-5)

    print("KERNEL_OK")
</pallas_src>

<mosaic_0001>
module attributes {stable_mosaic.version = 11 : i64} {
  func.func @_actnorm_fwd_kernel(%arg0: i32, %arg1: i32, %arg2: memref<8x256xf32, #tpu.memory_space<vmem>>, %arg3: memref<8x2xf32, #tpu.memory_space<vmem>>, %arg4: memref<8x256xf32, #tpu.memory_space<vmem>>) attributes {dimension_semantics = [#tpu.dimension_semantics<parallel>, #tpu.dimension_semantics<parallel>], iteration_bounds = array<i64: 1, 1>, scalar_prefetch = 0 : i64, scratch_operands = 0 : i64, tpu.core_type = #tpu.core_type<tc>, window_params = [{transform_indices = @transform_0, window_bounds = array<i64: 8, 256>}, {transform_indices = @transform_1, window_bounds = array<i64: 8, 2>}, {transform_indices = @transform_2, window_bounds = array<i64: 8, 256>}]} {
    %c0 = arith.constant 0 : index
    %c0_0 = arith.constant 0 : index
    %0 = vector.load %arg2[%c0, %c0_0] : memref<8x256xf32, #tpu.memory_space<vmem>>, vector<8x256xf32>
    %c0_1 = arith.constant 0 : index
    %c0_2 = arith.constant 0 : index
    %1 = vector.load %arg3[%c0_1, %c0_2] : memref<8x2xf32, #tpu.memory_space<vmem>>, vector<8x2xf32>
    %2 = vector.extract_strided_slice %1 {offsets = [0, 0], sizes = [8, 1], strides = [1, 1]} : vector<8x2xf32> to vector<8x1xf32>
    %3 = vector.extract_strided_slice %1 {offsets = [0, 1], sizes = [8, 1], strides = [1, 1]} : vector<8x2xf32> to vector<8x1xf32>
    %4 = vector.broadcast %2 : vector<8x1xf32> to vector<8x256xf32>
    %5 = arith.addf %0, %4 : vector<8x256xf32>
    %6 = vector.broadcast %3 : vector<8x1xf32> to vector<8x256xf32>
    %7 = arith.mulf %5, %6 : vector<8x256xf32>
    %c0_3 = arith.constant 0 : index
    %c0_4 = arith.constant 0 : index
    %8 = vector.load %arg4[%c0_3, %c0_4] : memref<8x256xf32, #tpu.memory_space<vmem>>, vector<8x256xf32>
    tpu.vector_store %arg4[%c0_3, %c0_4], %7 {strides = array<i32>} : memref<8x256xf32, #tpu.memory_space<vmem>>, vector<8x256xf32>,
    return
  }
  func.func @transform_0(%arg0: i32, %arg1: i32) -> (i32, i32) {
    %c0_i32 = arith.constant 0 : i32
    return %arg0, %arg1 : i32, i32
  }
  func.func @transform_1(%arg0: i32, %arg1: i32) -> (i32, i32) {
    %c0_i32 = arith.constant 0 : i32
    %c0_i32_0 = arith.constant 0 : i32
    return %arg0, %c0_i32 : i32, i32
  }
  func.func @transform_2(%arg0: i32, %arg1: i32) -> (i32, i32) {
    %c0_i32 = arith.constant 0 : i32
    return %arg0, %arg1 : i32, i32
  }
}

</mosaic_0001>

<llo_original>
// kernel: tpu_custom_call.1
$region0: #{tpu_custom_call.1}
  #allocation0 [shape = 'u32[]', space=smem, size = 0x4, offset = 0x4, fixed_abs, tag = 'smem constant byte address 0x4 - core index']
  #allocation1 [shape = 'u32[72,128]{1,0:T(1,128)}', space=vmem, size = 0x9000, scoped, tag = 'internal scratch']
  %s0 = inlined_call_operand.hbm [shape: f32[8,256], index: 0, kind: input, shape index: {}]
  %s1 = inlined_call_operand.vmem [shape: f32[8,2], index: 1, kind: input, shape index: {}]
  %s2 = inlined_call_operand.hbm [shape: f32[8,256], index: 2, kind: output, shape index: {}]
  %s3 = sld [smem:[#allocation0]]
  $region22: #{tpu_custom_call.1} parent=0
    _
  %s5 = ssub.s32 1, %s3
  %s6 = scalar_select 0, %s5, %s3
  $region1: #{tpu_custom_call.1} parent=0
    #allocation2 [shape = 'u8[8192]{0}', space=vmem, size = 0x2000, scoped, tag = 'input window, operand 0, single buffered']
    #allocation3 [shape = 's32[1]{0}', space=sflag, size = 0x4, scoped, tag = 'scoped memory for tpu_custom_call.1']
    #allocation4 [shape = 's32[1]{0}', space=sflag, size = 0x4, scoped, tag = 'scoped memory for tpu_custom_call.1']
    #allocation5 [shape = 'u8[8192]{0}', space=vmem, size = 0x2000, scoped, tag = 'output window, operand 0, single buffered']
    %7 = vsyncpa [#allocation3], 0
    %8 = vsyncpa [#allocation4], 0
    // Predicated region
    $region2: #{tpu_custom_call.1} parent=1 // pred_check
      _
    $region3: #{tpu_custom_call.1} parent=1 // pred_check_branch
      %10 = sbr.rel (0) target = $region5
    $region4: #{tpu_custom_call.1} parent=1 // pred_region
      %12 = vsyncadd [#allocation3], 0
      %s14 = sshll.u32 %s0, 4
      %s15 = int_to_ptr.hbm [resolvable:$true] %s14
      %s16 = sshll.u32 [#allocation2], 4
      %s17 = int_to_ptr.vmem [resolvable:$true] %s16
      %19 = dma.hbm_to_vmem [thread:$0]  %s15, 256, %s17, [#allocation3]
    $region5: #{tpu_custom_call.1} parent=1 // pred_fallthru
      _
    // Predicated region
    $region6: #{tpu_custom_call.1} parent=1 // pred_check
      _
    $region7: #{tpu_custom_call.1} parent=1 // pred_check_branch
      %21 = sbr.rel (0) target = $region9
    $region8: #{tpu_custom_call.1} parent=1 // pred_region
      _
    $region9: #{tpu_custom_call.1} parent=1 // pred_fallthru
      _
    // Predicated region
    $region10: #{tpu_custom_call.1} parent=1 // pred_check
      _
    $region11: #{tpu_custom_call.1} parent=1 // pred_check_branch
      %23 = sbr.rel (0) target = $region13
    $region12: #{tpu_custom_call.1} parent=1 // pred_region
      %25 = dma.done [#allocation3], 256
    $region13: #{tpu_custom_call.1} parent=1 // pred_fallthru
      _
    %v26 = vld [vmem:[#allocation2] sm:$0xff]
    %v27 = vld [vmem:[#allocation2 + $0x8] sm:$0xff]
    %v28 = vld [vmem:[%s1] sm:$0xff]
    %30 = vset.pattern.permute.xlu0 0
    %31 = vperm.xlu0 %30, %v28
    %v32 = vpop.permute.xlu0 %31
    %v34 = vadd.f32 %v26, %v32
    %v35 = vadd.f32 %v27, %v32
    %36 = vset.pattern.permute.xlu0 1
    %37 = vperm.xlu0 %36, %v28
    %v38 = vpop.permute.xlu0 %37
    %v40 = vmul.f32 %v34, %v38
    %v41 = vmul.f32 %v35, %v38
    %42 = vst [vmem:[#allocation5] sm:$0xff] %v40
    %43 = vst [vmem:[#allocation5 + $0x8] sm:$0xff] %v41
    // Predicated region
    $region14: #{tpu_custom_call.1} parent=1 // pred_check
      _
    $region15: #{tpu_custom_call.1} parent=1 // pred_check_branch
      %45 = sbr.rel (0) target = $region17
    $region16: #{tpu_custom_call.1} parent=1 // pred_region
      %47 = vsyncadd [#allocation4], 0
      %s49 = sshll.u32 [#allocation5], 4
      %s50 = int_to_ptr.vmem [resolvable:$true] %s49
      %s51 = sshll.u32 %s2, 4
      %s52 = int_to_ptr.hbm [resolvable:$true] %s51
      %54 = dma.vmem_to_hbm [thread:$0]  %s50, 256, %s52, [#allocation4]
    $region17: #{tpu_custom_call.1} parent=1 // pred_fallthru
      _
    // Predicated region
    $region18: #{tpu_custom_call.1} parent=1 // pred_check
      _
    $region19: #{tpu_custom_call.1} parent=1 // pred_check_branch
      %56 = sbr.rel (0) target = $region21
    $region20: #{tpu_custom_call.1} parent=1 // pred_region
      %58 = dma.done [#allocation4], 256
    $region21: #{tpu_custom_call.1} parent=1 // pred_fallthru
      _
    %59 = vsyncpa [#allocation3], 1
    %60 = vsyncpa [#allocation4], 1

</llo_original>
